<compile_context>
chip_gen: v7x
topology: tpu7x:2x2x1
jax: 0.10.0
libtpu: 0.0.40
codegen_flags: <defaults>
</compile_context>

<pallas_src>
import jax
import jax.numpy as jnp
from jax import lax
from jax.experimental import pallas as pl
from jax.experimental.pallas import tpu as pltpu

_LANE = 128
_SUBLANE = 8


def _round_up(x, m):
    return (x + m - 1) // m * m


def _vmem_capacity_bytes():
    """Physical VMEM per TensorCore (generation-aware budget source)."""
    try:
        return int(pltpu.get_tpu_info().vmem_capacity_bytes)
    except Exception:
        pass
    try:
        kind = jax.devices()[0].device_kind.lower()
        if any(tag in kind for tag in ("v4", "v5", "v6")):
            return 128 << 20
    except Exception:
        pass
    return 64 << 20  # conservative: v7x has 64 MiB per TensorCore


def _logreg_kernel(x_ref, w_ref, b_ref, o_ref):
    # x_ref: (TILE_B, D) VMEM (streamed)   w_ref: (1, D) VMEM (resident)
    # b_ref: (1, 1) SMEM scalar            o_ref: (1, TILE_B) VMEM (lane-dense)
    #
    # GEMV: contract D of both operands -> (1, TILE_B).  This is the
    # transposed-RHS MXU matmul (equivalent to pl.dot(w, x, trans_b=True));
    # the (TILE_B, D) tile itself is not transposed through the XLU.
    z = lax.dot_general(
        w_ref[...],
        x_ref[...],
        dimension_numbers=(((1,), (1,)), ((), ())),
        preferred_element_type=jnp.float32,
    )
    z = z + b_ref[0, 0]
    # Exact, numerically stable sigmoid: sigmoid(z) = 0.5 * (1 + tanh(z / 2)).
    o_ref[...] = 0.5 * (1.0 + jnp.tanh(0.5 * z))


def logistic_regression_forward(x, w, b, *, tile_b=None):
    """x: (B, D) f32, w: (D, 1) f32, b: (1, 1) f32 -> (B, 1) f32 = sigmoid(x@w + b)."""
    B, D = x.shape
    assert w.shape == (D, 1) and b.shape == (1, 1)

    cap = _vmem_capacity_bytes()
    d_pad = _round_up(D, _LANE)  # lane padding of the x tile / w row in VMEM

    # Padded VMEM cost per batch row: 2 double-buffered x rows (f32, lanes
    # padded to 128) + 2 double-buffered output rows (1 sublane padded to 8).
    per_row_bytes = 2 * d_pad * 4 + 2 * _SUBLANE * 4
    # Resident w row (sublane-padded, 2 buffers) + headroom for Mosaic scratch.
    fixed_bytes = 2 * _SUBLANE * d_pad * 4 + (4 << 20)

    if tile_b is None:
        # ~75% of physical VMEM: ~48 MiB on v7x (64 MiB/TC), ~96 MiB on v5e/v6e.
        budget = int(cap * 0.75)
        tile_b = max((budget - fixed_bytes) // per_row_bytes, _LANE)
        tile_b = (tile_b // _LANE) * _LANE  # lane-dense output rows
    # Never allocate (much) more rows than exist; keep sublane granularity.
    tile_b = max(_SUBLANE, min(_round_up(tile_b, _SUBLANE), _round_up(B, _SUBLANE)))

    num_tiles = pl.cdiv(B, tile_b)
    # v7x megacore: the "parallel" batch axis needs >= 2 grid steps to shard.
    if num_tiles == 1 and B > 2 * _LANE:
        tile_b = _round_up((B + 1) // 2, _LANE)
        num_tiles = pl.cdiv(B, tile_b)
    b_total = num_tiles * tile_b  # output buffer rows (>= B; tail sliced off)

    w_row = w.reshape(1, D)  # lane-dense weight row, resident across grid steps

    # Explicit VMEM limit from the padded footprint (defaults are too small on
    # v5e and too large to assume on v7x).
    need = per_row_bytes * tile_b + fixed_bytes
    vmem_limit = int(min(max(need, 32 << 20), int(cap * 0.85)))

    cost = pl.CostEstimate(
        flops=2 * B * D + 4 * B,          # GEMV + bias + sigmoid arithmetic
        transcendentals=B,                # one tanh per row
        bytes_accessed=4 * (B * D + D + 1 + B),
    )

    out = pl.pallas_call(
        _logreg_kernel,
        out_shape=jax.ShapeDtypeStruct((1, b_total), jnp.float32),
        grid_spec=pltpu.PrefetchScalarGridSpec(
            num_scalar_prefetch=0,
            grid=(num_tiles,),
            in_specs=[
                pl.BlockSpec((tile_b, D), lambda i: (i, 0)),         # stream x (ragged tail OK)
                pl.BlockSpec((1, D), lambda i: (0, 0)),              # w resident
                pl.BlockSpec(memory_space=pltpu.MemorySpace.SMEM),   # bias scalar
            ],
            out_specs=pl.BlockSpec((1, tile_b), lambda i: (0, i)),   # lane-dense row
        ),
        compiler_params=pltpu.CompilerParams(
            dimension_semantics=("parallel",),
            vmem_limit_bytes=vmem_limit,
        ),
        cost_estimate=cost,
    )(x, w_row, b)

    # (1, num_tiles*TILE_B) lane-dense rows -> (B, 1); drop the ragged tail.
    return out[0, :B].reshape(B, 1)


if __name__ == "__main__":
    key = jax.random.PRNGKey(0)
    k_x, k_w, k_b = jax.random.split(key, 3)

    batch = 8
    n_inputs = 32  # INPUT_LAYER_SIZE

    x = jax.random.normal(k_x, (batch, n_inputs), dtype=jnp.float32)
    w = jax.random.normal(k_w, (n_inputs, 1), dtype=jnp.float32)   # (INPUT, HIDDEN=1)
    b = jax.random.normal(k_b, (1, 1), dtype=jnp.float32)          # (1, OUTPUT=1)

    out = logistic_regression_forward(x, w, b)
    jax.block_until_ready(out)

    # Cross-check against plain JAX reference (exact sigmoid -> tight tolerance).
    ref = 1.0 / (1.0 + jnp.exp(-(x @ w + b)))
    assert out.shape == (batch, 1)
    max_err = float(jnp.max(jnp.abs(out - ref)))
    assert max_err < 1e-5, max_err

    print("KERNEL_OK")
</pallas_src>

<mosaic_0001>
module attributes {stable_mosaic.version = 11 : i64} {
  func.func @_logreg_kernel(%arg0: i32, %arg1: memref<8x32xf32, #tpu.memory_space<vmem>>, %arg2: memref<1x32xf32, #tpu.memory_space<vmem>>, %arg3: memref<1x1xf32, #tpu.memory_space<smem>>, %arg4: memref<1x8xf32, #tpu.memory_space<vmem>>) attributes {dimension_semantics = [#tpu.dimension_semantics<parallel>], iteration_bounds = array<i64: 1>, scalar_prefetch = 0 : i64, scratch_operands = 0 : i64, tpu.core_type = #tpu.core_type<tc>, window_params = [{transform_indices = @transform_0, window_bounds = array<i64: 8, 32>}, {pipeline_mode = #tpu.pipeline_mode<synchronous>, transform_indices = @transform_1, window_bounds = array<i64: 1, 32>}, {transform_indices = @transform_2, window_bounds = array<i64: 1, 1>}, {transform_indices = @transform_3, window_bounds = array<i64: 1, 8>}]} {
    %c0 = arith.constant 0 : index
    %c0_0 = arith.constant 0 : index
    %0 = vector.load %arg2[%c0, %c0_0] : memref<1x32xf32, #tpu.memory_space<vmem>>, vector<1x32xf32>
    %c0_1 = arith.constant 0 : index
    %c0_2 = arith.constant 0 : index
    %1 = vector.load %arg1[%c0_1, %c0_2] : memref<8x32xf32, #tpu.memory_space<vmem>>, vector<8x32xf32>
    %cst = arith.constant dense<0.000000e+00> : vector<1x8xf32>
    %2 = tpu.matmul %0, %1, %cst {dimension_numbers = #tpu.dot_dimension_numbers<[1], [1], [0], [0], [0, 0, 1, 0], [], []>} : vector<1x32xf32>, vector<8x32xf32>, vector<1x8xf32> -> vector<1x8xf32>
    %c0_3 = arith.constant 0 : index
    %c0_4 = arith.constant 0 : index
    %3 = memref.load %arg3[%c0_3, %c0_4] : memref<1x1xf32, #tpu.memory_space<smem>>
    %4 = vector.broadcast %3 : f32 to vector<1x8xf32>
    %5 = arith.addf %2, %4 : vector<1x8xf32>
    %cst_5 = arith.constant 5.000000e-01 : f32
    %6 = vector.broadcast %cst_5 : f32 to vector<1x8xf32>
    %7 = arith.mulf %6, %5 : vector<1x8xf32>
    %8 = math.tanh %7 : vector<1x8xf32>
    %cst_6 = arith.constant 1.000000e+00 : f32
    %9 = vector.broadcast %cst_6 : f32 to vector<1x8xf32>
    %10 = arith.addf %9, %8 : vector<1x8xf32>
    %cst_7 = arith.constant 5.000000e-01 : f32
    %11 = vector.broadcast %cst_7 : f32 to vector<1x8xf32>
    %12 = arith.mulf %11, %10 : vector<1x8xf32>
    %c0_8 = arith.constant 0 : index
    %c0_9 = arith.constant 0 : index
    %13 = vector.load %arg4[%c0_8, %c0_9] : memref<1x8xf32, #tpu.memory_space<vmem>>, vector<1x8xf32>
    tpu.vector_store %arg4[%c0_8, %c0_9], %12 {strides = array<i32>} : memref<1x8xf32, #tpu.memory_space<vmem>>, vector<1x8xf32>,
    return
  }
  func.func @transform_0(%arg0: i32) -> (i32, i32) {
    %c0_i32 = arith.constant 0 : i32
    %c0_i32_0 = arith.constant 0 : i32
    return %arg0, %c0_i32 : i32, i32
  }
  func.func @transform_1(%arg0: i32) -> (i32, i32) {
    %c0_i32 = arith.constant 0 : i32
    %c0_i32_0 = arith.constant 0 : i32
    %c0_i32_1 = arith.constant 0 : i32
    return %c0_i32, %c0_i32_0 : i32, i32
  }
  func.func @transform_2(%arg0: i32) -> (i32, i32) {
    %c0_i32 = arith.constant 0 : i32
    %c0_i32_0 = arith.constant 0 : i32
    %c0_i32_1 = arith.constant 0 : i32
    return %c0_i32, %c0_i32_0 : i32, i32
  }
  func.func @transform_3(%arg0: i32) -> (i32, i32) {
    %c0_i32 = arith.constant 0 : i32
    %c0_i32_0 = arith.constant 0 : i32
    return %c0_i32, %arg0 : i32, i32
  }
}

</mosaic_0001>

<llo_original>
// kernel: tpu_custom_call.1
$region0: #{tpu_custom_call.1}
  #allocation0 [shape = 'u32[]', space=smem, size = 0x4, offset = 0x4, fixed_abs, tag = 'smem constant byte address 0x4 - core index']
  #allocation1 [shape = 'u32[144,128]{1,0:T(1,128)}', space=vmem, size = 0x12000, scoped, tag = 'internal scratch']
  #allocation2 [shape = 'f32[1,1]{1,0:T(1,128)S(6)}', space=smem, size = 0x200, scoped, tag = 'scoped memory for tpu_custom_call.1']
  %s0 = inlined_call_operand.hbm [shape: f32[8,32], index: 0, kind: input, shape index: {}]
  %s1 = inlined_call_operand.vmem [shape: f32[1,32], index: 1, kind: input, shape index: {}]
  %s2 = inlined_call_operand.<no memory space> [shape: f32[1,1], index: 2, kind: input, shape index: {}]
  %s3 = inlined_call_operand.hbm [shape: f32[1,8], index: 3, kind: output, shape index: {}]
  %s4 = sld [smem:[#allocation0]]
  $region26: #{tpu_custom_call.1} parent=0
    _
  %s6 = ssub.s32 1, %s4
  %s7 = scalar_select 0, %s6, %s4
  %8 = sst [smem:[#allocation2]] %s2
  $region1: #{tpu_custom_call.1} parent=0
    #allocation3 [shape = 'u8[4096]{0}', space=vmem, size = 0x1000, scoped, tag = 'input window, operand 0, single buffered']
    #allocation4 [shape = 's32[1]{0}', space=sflag, size = 0x4, scoped, tag = 'scoped memory for tpu_custom_call.1']
    #allocation5 [shape = 's32[1]{0}', space=sflag, size = 0x4, scoped, tag = 'scoped memory for tpu_custom_call.1']
    #allocation6 [shape = 'u8[512]{0}', space=vmem, size = 0x400, scoped, tag = 'output window, operand 0, single buffered']
    %9 = vsyncpa [#allocation4], 0
    %10 = vsyncpa [#allocation5], 0
    // Predicated region
    $region2: #{tpu_custom_call.1} parent=1 // pred_check
      _
    $region3: #{tpu_custom_call.1} parent=1 // pred_check_branch
      %12 = sbr.rel (0) target = $region5
    $region4: #{tpu_custom_call.1} parent=1 // pred_region
      %s14 = ssub.s32 128, 128
      %15 = vsyncadd [#allocation4], %s14
      %s17 = sshll.u32 [#allocation3], 4
      %s18 = int_to_ptr.vmem [resolvable:$true] %s17
      %20 = dma.hbm_to_vmem [thread:$0]  %s0, 128, %s18, [#allocation4]
    $region5: #{tpu_custom_call.1} parent=1 // pred_fallthru
      _
    // Predicated region
    $region6: #{tpu_custom_call.1} parent=1 // pred_check
      _
    $region7: #{tpu_custom_call.1} parent=1 // pred_check_branch
      %22 = sbr.rel (0) target = $region9
    $region8: #{tpu_custom_call.1} parent=1 // pred_region
      _
    $region9: #{tpu_custom_call.1} parent=1 // pred_fallthru
      _
    // Predicated region
    $region10: #{tpu_custom_call.1} parent=1 // pred_check
      _
    $region11: #{tpu_custom_call.1} parent=1 // pred_check_branch
      %24 = sbr.rel (0) target = $region13
    $region12: #{tpu_custom_call.1} parent=1 // pred_region
      _
    $region13: #{tpu_custom_call.1} parent=1 // pred_fallthru
      _
    // Predicated region
    $region14: #{tpu_custom_call.1} parent=1 // pred_check
      _
    $region15: #{tpu_custom_call.1} parent=1 // pred_check_branch
      %26 = sbr.rel (0) target = $region17
    $region16: #{tpu_custom_call.1} parent=1 // pred_region
      %27 = dma.done [#allocation4], 128
    $region17: #{tpu_custom_call.1} parent=1 // pred_fallthru
      _
    %v28 = vld [vmem:[%s1] sm:$0x1]
    %v29 = vld [vmem:[#allocation3] sm:$0xff]
    %s30 = sld [smem:[#allocation2]]
    %v31 = vstv %s30
    %vm32 = vcmask 261120
    %v34 = vsel %vm32, %v28, 0
    %v37 = vsel %vm32, %v29, 0
    %39 = vmatprep.subr.mxu0 0.0
    %40 = vmatpush1.xpose.msra.mxu0 %v37
    %41 = vmatprep.subr.mxu0 0.0
    %42 = vmatpush1.xpose.msra.mxu0 0.0
    %43 = vmatprep.subr.mxu0 0.0
    %44 = vmatpush1.xpose.msra.mxu0 0.0
    %45 = vmatprep.subr.mxu0 0.0
    %46 = vmatpush1.xpose.msra.mxu0 0.0
    %47 = vmatprep.subr.mxu0 0.0
    %48 = vmatpush1.xpose.msra.mxu0 0.0
    %49 = vmatprep.subr.mxu0 0.0
    %50 = vmatpush1.xpose.msra.mxu0 0.0
    %51 = vmatprep.subr.mxu0 0.0
    %52 = vmatpush1.xpose.msra.mxu0 0.0
    %53 = vmatprep.subr.mxu0 0.0
    %54 = vmatpush1.xpose.msra.mxu0 0.0
    %55 = vmatprep.subr.mxu0 0.0
    %56 = vmatpush1.xpose.msra.mxu0 0.0
    %57 = vmatprep.subr.mxu0 0.0
    %58 = vmatpush1.xpose.msra.mxu0 0.0
    %59 = vmatprep.subr.mxu0 0.0
    %60 = vmatpush1.xpose.msra.mxu0 0.0
    %61 = vmatprep.subr.mxu0 0.0
    %62 = vmatpush1.xpose.msra.mxu0 0.0
    %63 = vmatprep.subr.mxu0 0.0
    %64 = vmatpush1.xpose.msra.mxu0 0.0
    %65 = vmatprep.subr.mxu0 0.0
    %66 = vmatpush1.xpose.msra.mxu0 0.0
    %67 = vmatprep.subr.mxu0 0.0
    %68 = vmatpush1.xpose.msra.mxu0 0.0
    %69 = vmatprep.subr.mxu0 0.0
    %70 = vmatpush1.xpose.msra.mxu0 0.0
    %71 = vmatprep.subr.mxu0 0.0
    %72 = vmatpush1.xpose.msra.mxu0 0.0
    %73 = vmatprep.subr.mxu0 0.0
    %74 = vmatpush1.xpose.msra.mxu0 0.0
    %75 = vmatprep.subr.mxu0 0.0
    %76 = vmatpush1.xpose.msra.mxu0 0.0
    %77 = vmatprep.subr.mxu0 0.0
    %78 = vmatpush1.xpose.msra.mxu0 0.0
    %79 = vmatprep.subr.mxu0 0.0
    %80 = vmatpush1.xpose.msra.mxu0 0.0
    %81 = vmatprep.subr.mxu0 0.0
    %82 = vmatpush1.xpose.msra.mxu0 0.0
    %83 = vmatprep.subr.mxu0 0.0
    %84 = vmatpush1.xpose.msra.mxu0 0.0
    %85 = vmatprep.subr.mxu0 0.0
    %86 = vmatpush1.xpose.msra.mxu0 0.0
    %87 = vmatprep.subr.mxu0 0.0
    %88 = vmatpush1.xpose.msra.mxu0 0.0
    %89 = vmatprep.subr.mxu0 0.0
    %90 = vmatpush1.xpose.msra.mxu0 0.0
    %91 = vmatprep.subr.mxu0 0.0
    %92 = vmatpush1.xpose.msra.mxu0 0.0
    %93 = vmatprep.subr.mxu0 0.0
    %94 = vmatpush1.xpose.msra.mxu0 0.0
    %95 = vmatprep.subr.mxu0 0.0
    %96 = vmatpush1.xpose.msra.mxu0 0.0
    %97 = vmatprep.subr.mxu0 0.0
    %98 = vmatpush1.xpose.msra.mxu0 0.0
    %99 = vmatprep.subr.mxu0 0.0
    %100 = vmatpush1.xpose.msra.mxu0 0.0
    %101 = vmatprep.subr.mxu0 0.0
    %102 = vmatpush1.xpose.msra.mxu0 0.0
    %103 = vmatprep.mubr.f32.mxu0 0.0
    %104 = vmatmul.mubr.f32.gmra.mrb[0].mxu0 %v34
    %v105 = vpop.f32.mrb[0].mxu0
    %v106 = vadd.f32 %v31, %v105
    %v107 = vpop.f32.mrb[0].mxu0
    %108 = vdwg.mxu0
    %v109 = vmul.f32 %v106, 0.5
    %v110 = vtanh.pop %v109
    %v111 = vadd.f32 %v110, 1.0
    %v112 = vmul.f32 %v111, 0.5
    %vm113 = vcmask 57344
    %114 = vst.msk [vmem:[#allocation6] sm:$0x1] %vm113, %v112
    // Predicated region
    $region18: #{tpu_custom_call.1} parent=1 // pred_check
      _
    $region19: #{tpu_custom_call.1} parent=1 // pred_check_branch
      %116 = sbr.rel (0) target = $region21
    $region20: #{tpu_custom_call.1} parent=1 // pred_region
      %s118 = ssub.s32 16, 16
      %119 = vsyncadd [#allocation5], %s118
      %s121 = sshll.u32 [#allocation6], 4
      %s122 = int_to_ptr.vmem [resolvable:$true] %s121
      %124 = dma.vmem_to_hbm [thread:$0]  %s122, 16, %s3, [#allocation5]
    $region21: #{tpu_custom_call.1} parent=1 // pred_fallthru
      _
    // Predicated region
    $region22: #{tpu_custom_call.1} parent=1 // pred_check
      _
    $region23: #{tpu_custom_call.1} parent=1 // pred_check_branch
      %126 = sbr.rel (0) target = $region25
    $region24: #{tpu_custom_call.1} parent=1 // pred_region
      %127 = dma.done [#allocation5], 16
    $region25: #{tpu_custom_call.1} parent=1 // pred_fallthru
      _
    %128 = vsyncpa [#allocation4], 1
    %129 = vsyncpa [#allocation5], 1

</llo_original>
